<compile_context>
chip_gen: v7x
topology: tpu7x:2x2x1
jax: 0.10.0
libtpu: 0.0.40
codegen_flags: <defaults>
</compile_context>

<pallas_src>
import functools

import jax
import jax.numpy as jnp
from jax.experimental import pallas as pl
from jax.experimental.pallas import tpu as pltpu

EPS = 1e-5       # nn.LayerNorm default eps
LANE = 128
SUBLANE = 8
VMEM_HEADROOM = 8 << 20   # leave room for Mosaic internal scratch


def _round_up(n, m):
    return ((n + m - 1) // m) * m


def _resblock_kernel(x_ref, mask_ref, g_ref, beta_ref, w1_ref, b1_ref,
                     w2_ref, b2_ref, o_ref, xn_ref, acc_ref, *,
                     c_real, apply_mask, gelu_approximate):
    """One (tm, Cp) token tile x one hidden chunk of the projection.

    grid = (token tiles, hidden chunks).  xn (normalized input, bf16) and the
    f32 accumulator live in scratch and persist across the hidden-chunk axis.
    """
    k = pl.program_id(1)

    @pl.when(k == 0)
    def _layernorm():
        x = x_ref[...].astype(jnp.float32)
        inv_c = jnp.float32(1.0 / c_real)
        mu = jnp.sum(x, axis=-1, keepdims=True) * inv_c
        centered = x - mu
        if apply_mask:
            # Padded lanes of x are zero but (x - mu) is not; a {0,1} mask
            # multiply keeps them out of the variance (cheaper than the old
            # iota/compare/select pass and numerically exact).
            centered = centered * mask_ref[...]
        var = jnp.sum(centered * centered, axis=-1, keepdims=True) * inv_c
        xn = centered * jax.lax.rsqrt(var + EPS)
        xn = xn * g_ref[...] + beta_ref[...]      # padded lanes -> exactly 0
        acc_ref[...] = xn                         # residual term (f32)
        xn_ref[...] = xn.astype(jnp.bfloat16)     # MXU lhs, reused across k

    # Hidden chunk k of proj: GELU(xn @ w1[:, ks] + b1[ks]) @ w2[ks, :]
    h = jnp.dot(xn_ref[...], w1_ref[...], preferred_element_type=jnp.float32)
    h = h + b1_ref[...]
    # TODO(synk): on v6e/v7x do the bias-add + GELU in packed bf16 (2x VALU
    # lane density); kept f32 here so the same kernel stays optimal on v5e.
    h = jax.nn.gelu(h, approximate=gelu_approximate)
    acc_ref[...] += jnp.dot(h.astype(jnp.bfloat16), w2_ref[...],
                            preferred_element_type=jnp.float32)

    @pl.when(k == pl.num_programs(1) - 1)
    def _finalize():
        o_ref[...] = (acc_ref[...] + b2_ref[...]).astype(o_ref.dtype)


def prepare_params(params, channels):
    """One-time prep: transpose to (in,out), cast weights to bf16, pad C->128k."""
    C = channels
    Cp = _round_up(C, LANE)
    pad_c = Cp - C

    def vec(v):
        return jnp.pad(v.astype(jnp.float32), (0, pad_c)).reshape(1, Cp)

    def mat(w):  # PyTorch Linear weight is (out, in); kernel wants (in, out).
        return jnp.pad(w.T.astype(jnp.bfloat16), ((0, pad_c), (0, pad_c)))

    return {
        "channels": C,
        "mask": vec(jnp.ones((C,), jnp.float32)),   # 1 on real lanes, 0 on pad
        "gamma": vec(params["ln_gamma"]),
        "beta": vec(params["ln_beta"]),
        "w1": mat(params["w1"]),
        "b1": vec(params["b1"]),
        "w2": mat(params["w2"]),
        "b2": vec(params["b2"]),
    }


def _vmem_budget():
    """Per-core VMEM budget (generation aware), minus headroom."""
    try:
        phys = int(pltpu.get_tpu_info().vmem_capacity_bytes)
    except Exception:
        phys = 64 << 20   # info query unavailable -> assume smallest (v7x per-TC)
    return phys - VMEM_HEADROOM


def _footprint_bytes(tm, tk, Cp, in_item, out_item):
    """Conservative per-grid-step VMEM footprint model."""
    nbuf = 2                                     # Pallas double-buffers pipelined blocks
    w = nbuf * 2 * Cp * tk * 2                   # w1 (Cp,tk) + w2 (tk,Cp) blocks, bf16
    vecs = nbuf * 4 * (4 * Cp + tk)              # gamma/beta/b2/mask (Cp) + b1 (tk), f32
    io = nbuf * tm * Cp * (in_item + out_item)   # x tile + out tile
    scratch = tm * Cp * (2 + 4)                  # xn bf16 + f32 accumulator
    temps = 6 * tm * Cp * 4                      # ~6 live (tm, Cp) f32-sized temporaries
    return w + vecs + io + scratch + temps


def _select_tiling(T, Cp, in_item, out_item, tm_req, budget):
    """Pick (token tile, hidden chunk, #hidden chunks) that fits the budget.

    Prefer resident weights (single hidden chunk) with the largest token tile;
    only stream the weights in hidden chunks once residency cannot fit, and do
    not drop the token tile below 128 rows until chunking is exhausted.
    """
    tm_max = max(SUBLANE, min(_round_up(tm_req, SUBLANE), _round_up(T, SUBLANE)))
    tm_opts, t = [], tm_max
    while True:
        tm_opts.append(t)
        if t <= SUBLANE:
            break
        t = max(SUBLANE, _round_up(t // 2, SUBLANE))
    nk_opts = [n for n in (1, 2, 4, 8, 16, 32, 64) if Cp % (n * LANE) == 0]

    for nk in nk_opts:
        for tm in tm_opts:
            if tm < 128 and nk != nk_opts[-1]:
                break                 # try more hidden chunks before tiny tiles
            if _footprint_bytes(tm, Cp // nk, Cp, in_item, out_item) <= budget:
                return tm, Cp // nk, nk
    return tm_opts[-1], Cp // nk_opts[-1], nk_opts[-1]   # best effort


def simple_res_block(x, prep, *, tm=512, gelu_approximate=True, out_dtype=None):
    """x: (..., C) float.  prep: output of prepare_params."""
    C = prep["channels"]
    Cp = prep["gamma"].shape[-1]
    assert x.shape[-1] == C
    lead = x.shape[:-1]
    out_dtype = x.dtype if out_dtype is None else jnp.dtype(out_dtype)

    x2d = x.reshape(-1, C)
    T = x2d.shape[0]
    if Cp != C:   # channel pad only; the token axis uses partial last blocks
        x2d = jnp.pad(x2d, ((0, 0), (0, Cp - C)))

    budget = _vmem_budget()
    tm_eff, tk, nk = _select_tiling(
        T, Cp, jnp.dtype(x2d.dtype).itemsize, jnp.dtype(out_dtype).itemsize,
        tm, budget)
    nt = pl.cdiv(T, tm_eff)

    kernel = functools.partial(
        _resblock_kernel, c_real=C, apply_mask=(Cp != C),
        gelu_approximate=gelu_approximate)

    def const(shape):
        return pl.BlockSpec(shape, lambda t, k: (0, 0))

    # TODO(synk): when nk == 1 the weight blocks are grid-constant and could be
    # single-buffered (pl.Buffered(1) or a one-shot manual DMA into scratch);
    # the footprint model above already accounts for default double buffering.
    grid_spec = pltpu.PrefetchScalarGridSpec(
        num_scalar_prefetch=0,
        grid=(nt, nk),
        in_specs=[
            pl.BlockSpec((tm_eff, Cp), lambda t, k: (t, 0)),   # x tile
            const((1, Cp)),                                    # pad mask
            const((1, Cp)),                                    # gamma
            const((1, Cp)),                                    # beta
            pl.BlockSpec((Cp, tk), lambda t, k: (0, k)),       # w1 column chunk
            pl.BlockSpec((1, tk), lambda t, k: (0, k)),        # b1 chunk
            pl.BlockSpec((tk, Cp), lambda t, k: (k, 0)),       # w2 row chunk
            const((1, Cp)),                                    # b2
        ],
        out_specs=pl.BlockSpec((tm_eff, Cp), lambda t, k: (t, 0)),
        scratch_shapes=[
            pltpu.VMEM((tm_eff, Cp), jnp.bfloat16),   # xn (MXU lhs, reused over k)
            pltpu.VMEM((tm_eff, Cp), jnp.float32),    # residual + proj accumulator
        ],
    )

    out = pl.pallas_call(
        kernel,
        out_shape=jax.ShapeDtypeStruct((T, Cp), out_dtype),
        grid_spec=grid_spec,
        compiler_params=pltpu.CompilerParams(
            # Token axis is independent (shards across TCs on v7x); the
            # hidden-chunk axis carries the accumulator.
            dimension_semantics=("parallel", "arbitrary"),
            vmem_limit_bytes=budget,
        ),
    )(x2d, prep["mask"], prep["gamma"], prep["beta"],
      prep["w1"], prep["b1"], prep["w2"], prep["b2"])

    if Cp != C:
        out = out[:, :C]
    return out.reshape(*lead, C)


def init_params(key, channels):
    k1, k2, k3, k4 = jax.random.split(key, 4)
    scale = 1.0 / jnp.sqrt(channels)
    return {
        # nn.LayerNorm default init: weight=1, bias=0
        "ln_gamma": jnp.ones((channels,), jnp.float32),
        "ln_beta": jnp.zeros((channels,), jnp.float32),
        # nn.Linear-style uniform(-1/sqrt(in), 1/sqrt(in)) init, deterministic
        "w1": jax.random.uniform(k1, (channels, channels), jnp.float32,
                                 -scale, scale),
        "b1": jax.random.uniform(k2, (channels,), jnp.float32, -scale, scale),
        "w2": jax.random.uniform(k3, (channels, channels), jnp.float32,
                                 -scale, scale),
        "b2": jax.random.uniform(k4, (channels,), jnp.float32, -scale, scale),
    }


def _reference(x, p):
    # Pure-JAX f32 reference mirroring the PyTorch forward (exact erf GELU).
    mu = jnp.mean(x, axis=-1, keepdims=True)
    var = jnp.mean(jnp.square(x - mu), axis=-1, keepdims=True)
    xn = (x - mu) / jnp.sqrt(var + EPS) * p["ln_gamma"] + p["ln_beta"]
    h = xn @ p["w1"].T + p["b1"]
    h = jax.nn.gelu(h, approximate=False)
    y = h @ p["w2"].T + p["b2"]
    return xn + y


if __name__ == "__main__":
    key = jax.random.PRNGKey(0)
    kx, kp = jax.random.split(key)

    batch, seq, channels = 2, 8, 32
    x = jax.random.normal(kx, (batch, seq, channels), jnp.float32)
    params = init_params(kp, channels)
    prep = prepare_params(params, channels)

    out = simple_res_block(x, prep)
    out = jax.block_until_ready(out)

    ref = _reference(x, params)
    assert out.shape == (batch, seq, channels)
    # bf16 MXU inputs (f32 accumulation) + tanh GELU vs the f32/erf reference
    # -> loosened tolerance at this small C.
    err = float(jnp.max(jnp.abs(out - ref)))
    assert jnp.allclose(out, ref, atol=3e-2, rtol=3e-2), (
        f"mismatch vs reference (max |err| = {err})")

    print("KERNEL_OK")
</pallas_src>

<mosaic_0001>
module attributes {stable_mosaic.version = 11 : i64} {
  func.func @_resblock_kernel(%arg0: i32, %arg1: i32, %arg2: memref<16x128xf32, #tpu.memory_space<vmem>>, %arg3: memref<1x128xf32, #tpu.memory_space<vmem>>, %arg4: memref<1x128xf32, #tpu.memory_space<vmem>>, %arg5: memref<1x128xf32, #tpu.memory_space<vmem>>, %arg6: memref<128x128xbf16, #tpu.memory_space<vmem>>, %arg7: memref<1x128xf32, #tpu.memory_space<vmem>>, %arg8: memref<128x128xbf16, #tpu.memory_space<vmem>>, %arg9: memref<1x128xf32, #tpu.memory_space<vmem>>, %arg10: memref<16x128xf32, #tpu.memory_space<vmem>>, %arg11: memref<16x128xbf16, #tpu.memory_space<vmem>>, %arg12: memref<16x128xf32, #tpu.memory_space<vmem>>) attributes {dimension_semantics = [#tpu.dimension_semantics<parallel>, #tpu.dimension_semantics<arbitrary>], iteration_bounds = array<i64: 1, 1>, scalar_prefetch = 0 : i64, scratch_operands = 2 : i64, tpu.core_type = #tpu.core_type<tc>, window_params = [{transform_indices = @transform_0, window_bounds = array<i64: 16, 128>}, {pipeline_mode = #tpu.pipeline_mode<synchronous>, transform_indices = @transform_1, window_bounds = array<i64: 1, 128>}, {pipeline_mode = #tpu.pipeline_mode<synchronous>, transform_indices = @transform_2, window_bounds = array<i64: 1, 128>}, {pipeline_mode = #tpu.pipeline_mode<synchronous>, transform_indices = @transform_3, window_bounds = array<i64: 1, 128>}, {transform_indices = @transform_4, window_bounds = array<i64: 128, 128>}, {transform_indices = @transform_5, window_bounds = array<i64: 1, 128>}, {transform_indices = @transform_6, window_bounds = array<i64: 128, 128>}, {pipeline_mode = #tpu.pipeline_mode<synchronous>, transform_indices = @transform_7, window_bounds = array<i64: 1, 128>}, {transform_indices = @transform_8, window_bounds = array<i64: 16, 128>}]} {
    %c0_i32 = arith.constant 0 : i32
    %0 = arith.cmpi eq, %arg1, %c0_i32 : i32
    %1 = arith.extui %0 : i1 to i32
    %c0_i32_0 = arith.constant 0 : i32
    %2 = arith.cmpi ne, %1, %c0_i32_0 : i32
    scf.if %2 {
      %c0_19 = arith.constant 0 : index
      %c0_20 = arith.constant 0 : index
      %31 = vector.load %arg2[%c0_19, %c0_20] : memref<16x128xf32, #tpu.memory_space<vmem>>, vector<16x128xf32>
      %cst_21 = arith.constant dense<0.000000e+00> : vector<16xf32>
      %32 = vector.multi_reduction <add>, %31, %cst_21 [1] : vector<16x128xf32> to vector<16xf32>
      %33 = vector.shape_cast %32 : vector<16xf32> to vector<16x1xf32>
      %cst_22 = arith.constant 3.125000e-02 : f32
      %34 = vector.broadcast %cst_22 : f32 to vector<16x1xf32>
      %35 = arith.mulf %33, %34 : vector<16x1xf32>
      %36 = vector.broadcast %35 : vector<16x1xf32> to vector<16x128xf32>
      %37 = arith.subf %31, %36 : vector<16x128xf32>
      %c0_23 = arith.constant 0 : index
      %c0_24 = arith.constant 0 : index
      %38 = vector.load %arg3[%c0_23, %c0_24] : memref<1x128xf32, #tpu.memory_space<vmem>>, vector<1x128xf32>
      %39 = vector.broadcast %38 : vector<1x128xf32> to vector<16x128xf32>
      %40 = arith.mulf %37, %39 : vector<16x128xf32>
      %41 = arith.mulf %40, %40 : vector<16x128xf32>
      %cst_25 = arith.constant dense<0.000000e+00> : vector<16xf32>
      %42 = vector.multi_reduction <add>, %41, %cst_25 [1] : vector<16x128xf32> to vector<16xf32>
      %43 = vector.shape_cast %42 : vector<16xf32> to vector<16x1xf32>
      %cst_26 = arith.constant 3.125000e-02 : f32
      %44 = vector.broadcast %cst_26 : f32 to vector<16x1xf32>
      %45 = arith.mulf %43, %44 : vector<16x1xf32>
      %cst_27 = arith.constant 9.99999974E-6 : f32
      %46 = vector.broadcast %cst_27 : f32 to vector<16x1xf32>
      %47 = arith.addf %45, %46 : vector<16x1xf32>
      %48 = math.rsqrt %47 : vector<16x1xf32>
      %49 = vector.broadcast %48 : vector<16x1xf32> to vector<16x128xf32>
      %50 = arith.mulf %40, %49 : vector<16x128xf32>
      %c0_28 = arith.constant 0 : index
      %c0_29 = arith.constant 0 : index
      %51 = vector.load %arg4[%c0_28, %c0_29] : memref<1x128xf32, #tpu.memory_space<vmem>>, vector<1x128xf32>
      %52 = vector.broadcast %51 : vector<1x128xf32> to vector<16x128xf32>
      %53 = arith.mulf %50, %52 : vector<16x128xf32>
      %c0_30 = arith.constant 0 : index
      %c0_31 = arith.constant 0 : index
      %54 = vector.load %arg5[%c0_30, %c0_31] : memref<1x128xf32, #tpu.memory_space<vmem>>, vector<1x128xf32>
      %55 = vector.broadcast %54 : vector<1x128xf32> to vector<16x128xf32>
      %56 = arith.addf %53, %55 : vector<16x128xf32>
      %c0_32 = arith.constant 0 : index
      %c0_33 = arith.constant 0 : index
      %57 = vector.load %arg12[%c0_32, %c0_33] : memref<16x128xf32, #tpu.memory_space<vmem>>, vector<16x128xf32>
      tpu.vector_store %arg12[%c0_32, %c0_33], %56 {strides = array<i32>} : memref<16x128xf32, #tpu.memory_space<vmem>>, vector<16x128xf32>,
      %58 = arith.truncf %56 : vector<16x128xf32> to vector<16x128xbf16>
      %c0_34 = arith.constant 0 : index
      %c0_35 = arith.constant 0 : index
      %59 = vector.load %arg11[%c0_34, %c0_35] : memref<16x128xbf16, #tpu.memory_space<vmem>>, vector<16x128xbf16>
      tpu.vector_store %arg11[%c0_34, %c0_35], %58 {strides = array<i32>} : memref<16x128xbf16, #tpu.memory_space<vmem>>, vector<16x128xbf16>,
    } else {
    }
    %c0 = arith.constant 0 : index
    %c0_1 = arith.constant 0 : index
    %3 = vector.load %arg11[%c0, %c0_1] : memref<16x128xbf16, #tpu.memory_space<vmem>>, vector<16x128xbf16>
    %c0_2 = arith.constant 0 : index
    %c0_3 = arith.constant 0 : index
    %4 = vector.load %arg6[%c0_2, %c0_3] : memref<128x128xbf16, #tpu.memory_space<vmem>>, vector<128x128xbf16>
    %cst = arith.constant dense<0.000000e+00> : vector<16x128xf32>
    %5 = tpu.matmul %3, %4, %cst {dimension_numbers = #tpu.dot_dimension_numbers<[1], [0], [0], [1], [0, 0, 1, 1], [], []>} : vector<16x128xbf16>, vector<128x128xbf16>, vector<16x128xf32> -> vector<16x128xf32>
    %c0_4 = arith.constant 0 : index
    %c0_5 = arith.constant 0 : index
    %6 = vector.load %arg7[%c0_4, %c0_5] : memref<1x128xf32, #tpu.memory_space<vmem>>, vector<1x128xf32>
    %7 = vector.broadcast %6 : vector<1x128xf32> to vector<16x128xf32>
    %8 = arith.addf %5, %7 : vector<16x128xf32>
    %9 = arith.mulf %8, %8 : vector<16x128xf32>
    %10 = arith.mulf %8, %9 : vector<16x128xf32>
    %cst_6 = arith.constant 4.471500e-02 : f32
    %11 = vector.broadcast %cst_6 : f32 to vector<16x128xf32>
    %12 = arith.mulf %11, %10 : vector<16x128xf32>
    %13 = arith.addf %8, %12 : vector<16x128xf32>
    %cst_7 = arith.constant 0.797884583 : f32
    %14 = vector.broadcast %cst_7 : f32 to vector<16x128xf32>
    %15 = arith.mulf %14, %13 : vector<16x128xf32>
    %16 = math.tanh %15 : vector<16x128xf32>
    %cst_8 = arith.constant 1.000000e+00 : f32
    %17 = vector.broadcast %cst_8 : f32 to vector<16x128xf32>
    %18 = arith.addf %17, %16 : vector<16x128xf32>
    %cst_9 = arith.constant 5.000000e-01 : f32
    %19 = vector.broadcast %cst_9 : f32 to vector<16x128xf32>
    %20 = arith.mulf %19, %18 : vector<16x128xf32>
    %21 = arith.mulf %8, %20 : vector<16x128xf32>
    %c0_10 = arith.constant 0 : index
    %c0_11 = arith.constant 0 : index
    %22 = vector.load %arg12[%c0_10, %c0_11] : memref<16x128xf32, #tpu.memory_space<vmem>>, vector<16x128xf32>
    %23 = arith.truncf %21 : vector<16x128xf32> to vector<16x128xbf16>
    %c0_12 = arith.constant 0 : index
    %c0_13 = arith.constant 0 : index
    %24 = vector.load %arg8[%c0_12, %c0_13] : memref<128x128xbf16, #tpu.memory_space<vmem>>, vector<128x128xbf16>
    %cst_14 = arith.constant dense<0.000000e+00> : vector<16x128xf32>
    %25 = tpu.matmul %23, %24, %cst_14 {dimension_numbers = #tpu.dot_dimension_numbers<[1], [0], [0], [1], [0, 0, 1, 1], [], []>} : vector<16x128xbf16>, vector<128x128xbf16>, vector<16x128xf32> -> vector<16x128xf32>
    %26 = arith.addf %22, %25 : vector<16x128xf32>
    %c0_15 = arith.constant 0 : index
    %c0_16 = arith.constant 0 : index
    %27 = vector.load %arg12[%c0_15, %c0_16] : memref<16x128xf32, #tpu.memory_space<vmem>>, vector<16x128xf32>
    tpu.vector_store %arg12[%c0_15, %c0_16], %26 {strides = array<i32>} : memref<16x128xf32, #tpu.memory_space<vmem>>, vector<16x128xf32>,
    %c0_i32_17 = arith.constant 0 : i32
    %28 = arith.cmpi eq, %arg1, %c0_i32_17 : i32
    %29 = arith.extui %28 : i1 to i32
    %c0_i32_18 = arith.constant 0 : i32
    %30 = arith.cmpi ne, %29, %c0_i32_18 : i32
    scf.if %30 {
      %c0_19 = arith.constant 0 : index
      %c0_20 = arith.constant 0 : index
      %31 = vector.load %arg12[%c0_19, %c0_20] : memref<16x128xf32, #tpu.memory_space<vmem>>, vector<16x128xf32>
      %c0_21 = arith.constant 0 : index
      %c0_22 = arith.constant 0 : index
      %32 = vector.load %arg9[%c0_21, %c0_22] : memref<1x128xf32, #tpu.memory_space<vmem>>, vector<1x128xf32>
      %33 = vector.broadcast %32 : vector<1x128xf32> to vector<16x128xf32>
      %34 = arith.addf %31, %33 : vector<16x128xf32>
      %c0_23 = arith.constant 0 : index
      %c0_24 = arith.constant 0 : index
      %35 = vector.load %arg10[%c0_23, %c0_24] : memref<16x128xf32, #tpu.memory_space<vmem>>, vector<16x128xf32>
      tpu.vector_store %arg10[%c0_23, %c0_24], %34 {strides = array<i32>} : memref<16x128xf32, #tpu.memory_space<vmem>>, vector<16x128xf32>,
    } else {
    }
    return
  }
  func.func @transform_0(%arg0: i32, %arg1: i32) -> (i32, i32) {
    %c0_i32 = arith.constant 0 : i32
    %c0_i32_0 = arith.constant 0 : i32
    return %arg0, %c0_i32 : i32, i32
  }
  func.func @transform_1(%arg0: i32, %arg1: i32) -> (i32, i32) {
    %c0_i32 = arith.constant 0 : i32
    %c0_i32_0 = arith.constant 0 : i32
    %c0_i32_1 = arith.constant 0 : i32
    return %c0_i32, %c0_i32_0 : i32, i32
  }
  func.func @transform_2(%arg0: i32, %arg1: i32) -> (i32, i32) {
    %c0_i32 = arith.constant 0 : i32
    %c0_i32_0 = arith.constant 0 : i32
    %c0_i32_1 = arith.constant 0 : i32
    return %c0_i32, %c0_i32_0 : i32, i32
  }
  func.func @transform_3(%arg0: i32, %arg1: i32) -> (i32, i32) {
    %c0_i32 = arith.constant 0 : i32
    %c0_i32_0 = arith.constant 0 : i32
    %c0_i32_1 = arith.constant 0 : i32
    return %c0_i32, %c0_i32_0 : i32, i32
  }
  func.func @transform_4(%arg0: i32, %arg1: i32) -> (i32, i32) {
    %c0_i32 = arith.constant 0 : i32
    %c0_i32_0 = arith.constant 0 : i32
    return %c0_i32, %arg1 : i32, i32
  }
  func.func @transform_5(%arg0: i32, %arg1: i32) -> (i32, i32) {
    %c0_i32 = arith.constant 0 : i32
    %c0_i32_0 = arith.constant 0 : i32
    return %c0_i32, %arg1 : i32, i32
  }
  func.func @transform_6(%arg0: i32, %arg1: i32) -> (i32, i32) {
    %c0_i32 = arith.constant 0 : i32
    %c0_i32_0 = arith.constant 0 : i32
    return %arg1, %c0_i32 : i32, i32
  }
  func.func @transform_7(%arg0: i32, %arg1: i32) -> (i32, i32) {
    %c0_i32 = arith.constant 0 : i32
    %c0_i32_0 = arith.constant 0 : i32
    %c0_i32_1 = arith.constant 0 : i32
    return %c0_i32, %c0_i32_0 : i32, i32
  }
  func.func @transform_8(%arg0: i32, %arg1: i32) -> (i32, i32) {
    %c0_i32 = arith.constant 0 : i32
    %c0_i32_0 = arith.constant 0 : i32
    return %arg0, %c0_i32 : i32, i32
  }
}

</mosaic_0001>

<llo_original>
// kernel: tpu_custom_call.1
$region0: #{tpu_custom_call.1}
  #allocation0 [shape = 'u32[]', space=smem, size = 0x4, offset = 0x4, fixed_abs, tag = 'smem constant byte address 0x4 - core index']
  #allocation1 [shape = 'u32[144,128]{1,0:T(1,128)}', space=vmem, size = 0x12000, scoped, tag = 'internal scratch']
  #allocation2 [shape = 'bf16[16,128]{1,0:T(16,128)(2,1)}', space=vmem, size = 0x1000, scoped, tag = 'scratch operand']
  #allocation3 [shape = 'f32[16,128]{1,0:T(8,128)}', space=vmem, size = 0x2000, scoped, tag = 'scratch operand']
  %s0 = inlined_call_operand.hbm [shape: f32[16,128], index: 0, kind: input, shape index: {}]
  %s1 = inlined_call_operand.vmem [shape: f32[1,128], index: 1, kind: input, shape index: {}]
  %s2 = inlined_call_operand.vmem [shape: f32[1,128], index: 2, kind: input, shape index: {}]
  %s3 = inlined_call_operand.vmem [shape: f32[1,128], index: 3, kind: input, shape index: {}]
  %s4 = inlined_call_operand.hbm [shape: bf16[128,128], index: 4, kind: input, shape index: {}]
  %s5 = inlined_call_operand.vmem [shape: f32[1,128], index: 5, kind: input, shape index: {}]
  %s6 = inlined_call_operand.hbm [shape: bf16[128,128], index: 6, kind: input, shape index: {}]
  %s7 = inlined_call_operand.vmem [shape: f32[1,128], index: 7, kind: input, shape index: {}]
  %s8 = inlined_call_operand.hbm [shape: f32[16,128], index: 8, kind: output, shape index: {}]
  %s9 = sld [smem:[#allocation0]]
  $region62: #{tpu_custom_call.1} parent=0
    _
  %s11 = ssub.s32 1, %s9
  %s12 = scalar_select 0, %s11, %s9
  $region1: #{tpu_custom_call.1} parent=0
    #allocation4 [shape = 'u8[8192]{0}', space=vmem, size = 0x2000, scoped, tag = 'input window, operand 0, single buffered']
    #allocation5 [shape = 's32[1]{0}', space=sflag, size = 0x4, scoped, tag = 'scoped memory for tpu_custom_call.1']
    #allocation6 [shape = 's32[1]{0}', space=sflag, size = 0x4, scoped, tag = 'scoped memory for tpu_custom_call.1']
    #allocation7 [shape = 'u8[32768]{0}', space=vmem, size = 0x8000, scoped, tag = 'input window, operand 4, single buffered']
    #allocation8 [shape = 's32[1]{0}', space=sflag, size = 0x4, scoped, tag = 'scoped memory for tpu_custom_call.1']
    #allocation9 [shape = 'u8[32768]{0}', space=vmem, size = 0x8000, scoped, tag = 'input window, operand 6, single buffered']
    #allocation10 [shape = 'u8[8192]{0}', space=vmem, size = 0x2000, scoped, tag = 'output window, operand 0, single buffered']
    %13 = vsyncpa [#allocation5], 0
    %14 = vsyncpa [#allocation8], 0
    %15 = vsyncpa [#allocation6], 0
    // Predicated region
    $region2: #{tpu_custom_call.1} parent=1 // pred_check
      _
    $region3: #{tpu_custom_call.1} parent=1 // pred_check_branch
      %17 = sbr.rel (0) target = $region5
    $region4: #{tpu_custom_call.1} parent=1 // pred_region
      %s19 = ssub.s32 256, 256
      %20 = vsyncadd [#allocation5], %s19
      %s21 = sshll.u32 [#allocation4], 4
      %s22 = int_to_ptr.vmem [resolvable:$true] %s21
      %27 = dma.hbm_to_vmem [thread:$0]  %s0, 256, %s22, [#allocation5], 128, 128, 8
    $region5: #{tpu_custom_call.1} parent=1 // pred_fallthru
      _
    // Predicated region
    $region6: #{tpu_custom_call.1} parent=1 // pred_check
      _
    $region7: #{tpu_custom_call.1} parent=1 // pred_check_branch
      %29 = sbr.rel (0) target = $region9
    $region8: #{tpu_custom_call.1} parent=1 // pred_region
      _
    $region9: #{tpu_custom_call.1} parent=1 // pred_fallthru
      _
    // Predicated region
    $region10: #{tpu_custom_call.1} parent=1 // pred_check
      _
    $region11: #{tpu_custom_call.1} parent=1 // pred_check_branch
      %31 = sbr.rel (0) target = $region13
    $region12: #{tpu_custom_call.1} parent=1 // pred_region
      _
    $region13: #{tpu_custom_call.1} parent=1 // pred_fallthru
      _
    // Predicated region
    $region14: #{tpu_custom_call.1} parent=1 // pred_check
      _
    $region15: #{tpu_custom_call.1} parent=1 // pred_check_branch
      %33 = sbr.rel (0) target = $region17
    $region16: #{tpu_custom_call.1} parent=1 // pred_region
      _
    $region17: #{tpu_custom_call.1} parent=1 // pred_fallthru
      _
    // Predicated region
    $region18: #{tpu_custom_call.1} parent=1 // pred_check
      _
    $region19: #{tpu_custom_call.1} parent=1 // pred_check_branch
      %35 = sbr.rel (0) target = $region21
    $region20: #{tpu_custom_call.1} parent=1 // pred_region
      %s37 = ssub.s32 1024, 1024
      %38 = vsyncadd [#allocation8], %s37
      %s39 = sshll.u32 [#allocation7], 4
      %s40 = int_to_ptr.vmem [resolvable:$true] %s39
      %45 = dma.hbm_to_vmem [thread:$0]  %s4, 1024, %s40, [#allocation8], 64, 64, 4
    $region21: #{tpu_custom_call.1} parent=1 // pred_fallthru
      _
    // Predicated region
    $region22: #{tpu_custom_call.1} parent=1 // pred_check
      _
    $region23: #{tpu_custom_call.1} parent=1 // pred_check_branch
      %47 = sbr.rel (0) target = $region25
    $region24: #{tpu_custom_call.1} parent=1 // pred_region
      _
    $region25: #{tpu_custom_call.1} parent=1 // pred_fallthru
      _
    // Predicated region
    $region26: #{tpu_custom_call.1} parent=1 // pred_check
      _
    $region27: #{tpu_custom_call.1} parent=1 // pred_check_branch
      %49 = sbr.rel (0) target = $region29
    $region28: #{tpu_custom_call.1} parent=1 // pred_region
      %s51 = ssub.s32 1024, 1024
      %52 = vsyncadd [#allocation8], %s51
      %s53 = sshll.u32 [#allocation9], 4
      %s54 = int_to_ptr.vmem [resolvable:$true] %s53
      %59 = dma.hbm_to_vmem [thread:$0]  %s6, 1024, %s54, [#allocation8], 64, 64, 4
    $region29: #{tpu_custom_call.1} parent=1 // pred_fallthru
      _
    // Predicated region
    $region30: #{tpu_custom_call.1} parent=1 // pred_check
      _
    $region31: #{tpu_custom_call.1} parent=1 // pred_check_branch
      %61 = sbr.rel (0) target = $region33
    $region32: #{tpu_custom_call.1} parent=1 // pred_region
      _
    $region33: #{tpu_custom_call.1} parent=1 // pred_fallthru
      _
    // Predicated region
    $region34: #{tpu_custom_call.1} parent=1 // pred_check
      _
    $region35: #{tpu_custom_call.1} parent=1 // pred_check_branch
      %63 = sbr.rel (0) target = $region37
    $region36: #{tpu_custom_call.1} parent=1 // pred_region
      %64 = dma.done [#allocation5], 256
    $region37: #{tpu_custom_call.1} parent=1 // pred_fallthru
      _
    // Predicated region
    $region38: #{tpu_custom_call.1} parent=1 // pred_check
      _
    $region39: #{tpu_custom_call.1} parent=1 // pred_check_branch
      %66 = sbr.rel (0) target = $region41
    $region40: #{tpu_custom_call.1} parent=1 // pred_region
      %67 = dma.done [#allocation8], 1024
    $region41: #{tpu_custom_call.1} parent=1 // pred_fallthru
      _
    // Predicated region
    $region42: #{tpu_custom_call.1} parent=1 // pred_check
      _
    $region43: #{tpu_custom_call.1} parent=1 // pred_check_branch
      %69 = sbr.rel (0) target = $region45
    $region44: #{tpu_custom_call.1} parent=1 // pred_region
      %70 = dma.done [#allocation8], 1024
    $region45: #{tpu_custom_call.1} parent=1 // pred_fallthru
      _
    %p72 = scmp.eq.s32.totalorder 0, 0
    // Predicated region
    $region46: #{tpu_custom_call.1} parent=1 // pred_check
      %p73 = pneg %p72
    $region47: #{tpu_custom_call.1} parent=1 // pred_check_branch
      %75 = sbr.rel (%p73) target = $region49
    $region48: #{tpu_custom_call.1} parent=1 // pred_region
      %v76 = vld [vmem:[#allocation4] sm:$0xff]
      %v77 = vld [vmem:[#allocation4 + $0x8] sm:$0xff]
      %78 = vadd.xlane.f32.xlu0 %v76
      %v79 = vpop.xlane.xlu0 %78
      %80 = vadd.xlane.f32.xlu0 %v77
      %v81 = vpop.xlane.xlu0 %80
      %v82 = vmul.f32 %v79, 0.03125
      %v83 = vmul.f32 %v81, 0.03125
      %v84 = vsub.f32 %v76, %v82
      %v85 = vsub.f32 %v77, %v83
      %v86 = vld [vmem:[%s1] sm:$0x1]
      %v88 = vlaneseq
      %v89 = vshrl.u32 %v88, 7
      %v90 = vsub.s32 0, %v89
      %v91 = vrot.slane %v86, %v90
      %v93 = vmul.f32 %v84, %v91
      %v94 = vmul.f32 %v85, %v91
      %v95 = vmul.f32 %v93, %v93
      %v96 = vmul.f32 %v94, %v94
      %97 = vadd.xlane.f32.xlu0 %v95
      %v98 = vpop.xlane.xlu0 %97
      %99 = vadd.xlane.f32.xlu0 %v96
      %v100 = vpop.xlane.xlu0 %99
      %v101 = vmul.f32 %v98, 0.03125
      %v102 = vmul.f32 %v100, 0.03125
      %v103 = vadd.f32 %v101, 1e-05
      %v104 = vadd.f32 %v102, 1e-05
      %v105 = vrsqrt.pop %v103
      %v106 = vrsqrt.pop %v104
      %v107 = vmul.f32 %v93, %v105
      %v108 = vmul.f32 %v94, %v106
      %v109 = vld [vmem:[%s2] sm:$0x1]
      %v111 = vlaneseq
      %v112 = vshrl.u32 %v111, 7
      %v113 = vsub.s32 0, %v112
      %v114 = vrot.slane %v109, %v113
      %v116 = vmul.f32 %v107, %v114
      %v117 = vmul.f32 %v108, %v114
      %v118 = vld [vmem:[%s3] sm:$0x1]
      %v120 = vlaneseq
      %v121 = vshrl.u32 %v120, 7
      %v122 = vsub.s32 0, %v121
      %v123 = vrot.slane %v118, %v122
      %v125 = vadd.f32 %v116, %v123
      %v126 = vadd.f32 %v117, %v123
      %127 = vst [vmem:[#allocation3] sm:$0xff] %v125
      %128 = vst [vmem:[#allocation3 + $0x8] sm:$0xff] %v126
      %v129 = vpack.c.bf16 %v126, %v125
      %130 = vst [vmem:[#allocation2] sm:$0xff] %v129
    $region49: #{tpu_custom_call.1} parent=1 // pred_fallthru
      _
    %v131 = vld [vmem:[#allocation2] sm:$0xff]
    %v132 = vld [vmem:[#allocation7] sm:$0xf]
    %v133 = vld [vmem:[#allocation7 + $0x4] sm:$0xf]
    %v134 = vld [vmem:[#allocation7 + $0x8] sm:$0xf]
    %v135 = vld [vmem:[#allocation7 + $0xc] sm:$0xf]
    %v136 = vld [vmem:[#allocation7 + $0x10] sm:$0xf]
    %v137 = vld [vmem:[#allocation7 + $0x14] sm:$0xf]
    %v138 = vld [vmem:[#allocation7 + $0x18] sm:$0xf]
    %v139 = vld [vmem:[#allocation7 + $0x1c] sm:$0xf]
    %v140 = vld [vmem:[#allocation7 + $0x20] sm:$0xf]
    %v141 = vld [vmem:[#allocation7 + $0x24] sm:$0xf]
    %v142 = vld [vmem:[#allocation7 + $0x28] sm:$0xf]
    %v143 = vld [vmem:[#allocation7 + $0x2c] sm:$0xf]
    %v144 = vld [vmem:[#allocation7 + $0x30] sm:$0xf]
    %v145 = vld [vmem:[#allocation7 + $0x34] sm:$0xf]
    %v146 = vld [vmem:[#allocation7 + $0x38] sm:$0xf]
    %v147 = vld [vmem:[#allocation7 + $0x3c] sm:$0xf]
    %v148 = vld [vmem:[%s5] sm:$0x1]
    %v150 = vlaneseq
    %v151 = vshrl.u32 %v150, 7
    %v152 = vsub.s32 0, %v151
    %v153 = vrot.slane %v148, %v152
    %v171 = vunpack.c.l.b16 %v132
    %v172 = vunpack.c.l.b16 %v133
    %v173 = vunpack.c.l.b16 %v134
    %v174 = vunpack.c.l.b16 %v135
    %v175 = vunpack.c.l.b16 %v136
    %v176 = vunpack.c.l.b16 %v137
    %v177 = vunpack.c.l.b16 %v138
    %v178 = vunpack.c.l.b16 %v139
    %v179 = vunpack.c.l.b16 %v140
    %v180 = vunpack.c.l.b16 %v141
    %v181 = vunpack.c.l.b16 %v142
    %v182 = vunpack.c.l.b16 %v143
    %v183 = vunpack.c.l.b16 %v144
    %v184 = vunpack.c.l.b16 %v145
    %v185 = vunpack.c.l.b16 %v146
    %v186 = vunpack.c.l.b16 %v147
    %v187 = vpack.c.b16 %v172, %v171
    %v188 = vpack.c.b16 %v174, %v173
    %v189 = vpack.c.b16 %v176, %v175
    %v190 = vpack.c.b16 %v178, %v177
    %v191 = vpack.c.b16 %v180, %v179
    %v192 = vpack.c.b16 %v182, %v181
    %v193 = vpack.c.b16 %v184, %v183
    %v194 = vpack.c.b16 %v186, %v185
    %203 = vmatprep.subr.bf16.mxu0 0
    %204 = vmatpush1.bf16.msra.mxu0 %v187
    %205 = vmatprep.subr.bf16.mxu0 0
    %206 = vmatpush1.bf16.msra.mxu0 %v188
    %207 = vmatprep.subr.bf16.mxu0 0
    %208 = vmatpush1.bf16.msra.mxu0 %v189
    %209 = vmatprep.subr.bf16.mxu0 0
    %210 = vmatpush1.bf16.msra.mxu0 %v190
    %211 = vmatprep.subr.bf16.mxu0 0
    %212 = vmatpush1.bf16.msra.mxu0 %v191
    %213 = vmatprep.subr.bf16.mxu0 0
    %214 = vmatpush1.bf16.msra.mxu0 %v192
    %215 = vmatprep.subr.bf16.mxu0 0
    %216 = vmatpush1.bf16.msra.mxu0 %v193
    %217 = vmatprep.subr.bf16.mxu0 0
    %218 = vmatpush1.bf16.msra.mxu0 %v194
    %219 = vmatprep.subr.bf16.mxu0 0
    %220 = vmatpush1.bf16.msra.mxu0 0
    %221 = vmatprep.subr.bf16.mxu0 0
    %222 = vmatpush1.bf16.msra.mxu0 0
    %223 = vmatprep.subr.bf16.mxu0 0
    %224 = vmatpush1.bf16.msra.mxu0 0
    %225 = vmatprep.subr.bf16.mxu0 0
    %226 = vmatpush1.bf16.msra.mxu0 0
    %227 = vmatprep.subr.bf16.mxu0 0
    %228 = vmatpush1.bf16.msra.mxu0 0
    %229 = vmatprep.subr.bf16.mxu0 0
    %230 = vmatpush1.bf16.msra.mxu0 0
    %231 = vmatprep.subr.bf16.mxu0 0
    %232 = vmatpush1.bf16.msra.mxu0 0
    %233 = vmatprep.subr.bf16.mxu0 0
    %234 = vmatpush1.bf16.msra.mxu0 0
    %235 = vmatprep.mubr.bf16.mxu0 0
    %236 = vmatmul.mubr.bf16.gmra.mrb[0].mxu0 %v131
    %v237 = vpop.f32.mrb[0].mxu0
    %v238 = vadd.f32 %v153, %v237
    %v239 = vpop.f32.mrb[0].mxu0
    %v240 = vpop.f32.mrb[0].mxu0
    %v241 = vadd.f32 %v153, %v240
    %v242 = vpop.f32.mrb[0].mxu0
    %243 = vdwg.mxu0
    %v244 = vmul.f32 %v238, %v238
    %v245 = vmul.f32 %v241, %v241
    %v246 = vmul.f32 %v238, %v244
    %v247 = vmul.f32 %v241, %v245
    %v248 = vmul.f32 %v246, 0.044715
    %v249 = vmul.f32 %v247, 0.044715
    %v250 = vadd.f32 %v238, %v248
    %v251 = vadd.f32 %v241, %v249
    %v252 = vmul.f32 %v250, 0.7978846
    %v253 = vmul.f32 %v251, 0.7978846
    %v254 = vtanh.pop %v252
    %v255 = vtanh.pop %v253
    %v256 = vadd.f32 %v254, 1.0
    %v257 = vadd.f32 %v255, 1.0
    %v258 = vmul.f32 %v256, 0.5
    %v259 = vmul.f32 %v257, 0.5
    %v260 = vmul.f32 %v238, %v258
    %v261 = vmul.f32 %v241, %v259
    %v262 = vld [vmem:[#allocation3] sm:$0xff]
    %v263 = vld [vmem:[#allocation3 + $0x8] sm:$0xff]
    %v264 = vpack.c.bf16 %v261, %v260
    %v265 = vld [vmem:[#allocation9] sm:$0xf]
    %v266 = vld [vmem:[#allocation9 + $0x4] sm:$0xf]
    %v267 = vld [vmem:[#allocation9 + $0x8] sm:$0xf]
    %v268 = vld [vmem:[#allocation9 + $0xc] sm:$0xf]
    %v269 = vld [vmem:[#allocation9 + $0x10] sm:$0xf]
    %v270 = vld [vmem:[#allocation9 + $0x14] sm:$0xf]
    %v271 = vld [vmem:[#allocation9 + $0x18] sm:$0xf]
    %v272 = vld [vmem:[#allocation9 + $0x1c] sm:$0xf]
    %v273 = vld [vmem:[#allocation9 + $0x20] sm:$0xf]
    %v274 = vld [vmem:[#allocation9 + $0x24] sm:$0xf]
    %v275 = vld [vmem:[#allocation9 + $0x28] sm:$0xf]
    %v276 = vld [vmem:[#allocation9 + $0x2c] sm:$0xf]
    %v277 = vld [vmem:[#allocation9 + $0x30] sm:$0xf]
    %v278 = vld [vmem:[#allocation9 + $0x34] sm:$0xf]
    %v279 = vld [vmem:[#allocation9 + $0x38] sm:$0xf]
    %v280 = vld [vmem:[#allocation9 + $0x3c] sm:$0xf]
    %v297 = vunpack.c.l.b16 %v265
    %v298 = vunpack.c.l.b16 %v266
    %v299 = vunpack.c.l.b16 %v267
    %v300 = vunpack.c.l.b16 %v268
    %v301 = vunpack.c.l.b16 %v269
    %v302 = vunpack.c.l.b16 %v270
    %v303 = vunpack.c.l.b16 %v271
    %v304 = vunpack.c.l.b16 %v272
    %v305 = vunpack.c.l.b16 %v273
    %v306 = vunpack.c.l.b16 %v274
    %v307 = vunpack.c.l.b16 %v275
    %v308 = vunpack.c.l.b16 %v276
    %v309 = vunpack.c.l.b16 %v277
    %v310 = vunpack.c.l.b16 %v278
    %v311 = vunpack.c.l.b16 %v279
    %v312 = vunpack.c.l.b16 %v280
    %v313 = vpack.c.b16 %v298, %v297
    %v314 = vpack.c.b16 %v300, %v299
    %v315 = vpack.c.b16 %v302, %v301
    %v316 = vpack.c.b16 %v304, %v303
    %v317 = vpack.c.b16 %v306, %v305
    %v318 = vpack.c.b16 %v308, %v307
    %v319 = vpack.c.b16 %v310, %v309
    %v320 = vpack.c.b16 %v312, %v311
    %329 = vmatprep.subr.bf16.mxu0 0
    %330 = vmatpush1.bf16.msra.mxu0 %v313
    %331 = vmatprep.subr.bf16.mxu0 0
    %332 = vmatpush1.bf16.msra.mxu0 %v314
    %333 = vmatprep.subr.bf16.mxu0 0
    %334 = vmatpush1.bf16.msra.mxu0 %v315
    %335 = vmatprep.subr.bf16.mxu0 0
    %336 = vmatpush1.bf16.msra.mxu0 %v316
    %337 = vmatprep.subr.bf16.mxu0 0
    %338 = vmatpush1.bf16.msra.mxu0 %v317
    %339 = vmatprep.subr.bf16.mxu0 0
    %340 = vmatpush1.bf16.msra.mxu0 %v318
    %341 = vmatprep.subr.bf16.mxu0 0
    %342 = vmatpush1.bf16.msra.mxu0 %v319
    %343 = vmatprep.subr.bf16.mxu0 0
    %344 = vmatpush1.bf16.msra.mxu0 %v320
    %345 = vmatprep.subr.bf16.mxu0 0
    %346 = vmatpush1.bf16.msra.mxu0 0
    %347 = vmatprep.subr.bf16.mxu0 0
    %348 = vmatpush1.bf16.msra.mxu0 0
    %349 = vmatprep.subr.bf16.mxu0 0
    %350 = vmatpush1.bf16.msra.mxu0 0
    %351 = vmatprep.subr.bf16.mxu0 0
    %352 = vmatpush1.bf16.msra.mxu0 0
    %353 = vmatprep.subr.bf16.mxu0 0
    %354 = vmatpush1.bf16.msra.mxu0 0
    %355 = vmatprep.subr.bf16.mxu0 0
    %356 = vmatpush1.bf16.msra.mxu0 0
    %357 = vmatprep.subr.bf16.mxu0 0
    %358 = vmatpush1.bf16.msra.mxu0 0
    %359 = vmatprep.subr.bf16.mxu0 0
    %360 = vmatpush1.bf16.msra.mxu0 0
    %361 = vmatprep.mubr.bf16.mxu0 0
    %362 = vmatmul.mubr.bf16.gmra.mrb[0].mxu0 %v264
    %v363 = vpop.f32.mrb[0].mxu0
    %v364 = vadd.f32 0.0, %v363
    %v365 = vpop.f32.mrb[0].mxu0
    %v366 = vpop.f32.mrb[0].mxu0
    %v367 = vadd.f32 0.0, %v366
    %v368 = vpop.f32.mrb[0].mxu0
    %369 = vdwg.mxu0
    %v370 = vadd.f32 %v262, %v364
    %v371 = vadd.f32 %v263, %v367
    %372 = vst [vmem:[#allocation3] sm:$0xff] %v370
    %373 = vst [vmem:[#allocation3 + $0x8] sm:$0xff] %v371
    // Predicated region
    $region50: #{tpu_custom_call.1} parent=1 // pred_check
      %p374 = pneg %p72
    $region51: #{tpu_custom_call.1} parent=1 // pred_check_branch
      %376 = sbr.rel (%p374) target = $region53
    $region52: #{tpu_custom_call.1} parent=1 // pred_region
      %v377 = vld [vmem:[#allocation3] sm:$0xff]
      %v378 = vld [vmem:[#allocation3 + $0x8] sm:$0xff]
      %v379 = vld [vmem:[%s7] sm:$0x1]
      %v381 = vlaneseq
      %v382 = vshrl.u32 %v381, 7
      %v383 = vsub.s32 0, %v382
      %v384 = vrot.slane %v379, %v383
      %v386 = vadd.f32 %v377, %v384
      %v387 = vadd.f32 %v378, %v384
      %388 = vst [vmem:[#allocation10] sm:$0xff] %v386
      %389 = vst [vmem:[#allocation10 + $0x8] sm:$0xff] %v387
    $region53: #{tpu_custom_call.1} parent=1 // pred_fallthru
      _
    // Predicated region
    $region54: #{tpu_custom_call.1} parent=1 // pred_check
      _
    $region55: #{tpu_custom_call.1} parent=1 // pred_check_branch
      %391 = sbr.rel (0) target = $region57
    $region56: #{tpu_custom_call.1} parent=1 // pred_region
      %s393 = ssub.s32 256, 256
      %394 = vsyncadd [#allocation6], %s393
      %s395 = sshll.u32 [#allocation10], 4
      %s396 = int_to_ptr.vmem [resolvable:$true] %s395
      %401 = dma.vmem_to_hbm [thread:$0]  %s396, 256, %s8, [#allocation6], 128, 128, 8
    $region57: #{tpu_custom_call.1} parent=1 // pred_fallthru
      _
    // Predicated region
    $region58: #{tpu_custom_call.1} parent=1 // pred_check
      _
    $region59: #{tpu_custom_call.1} parent=1 // pred_check_branch
      %403 = sbr.rel (0) target = $region61
    $region60: #{tpu_custom_call.1} parent=1 // pred_region
      %404 = dma.done [#allocation6], 256
    $region61: #{tpu_custom_call.1} parent=1 // pred_fallthru
      _
    %405 = vsyncpa [#allocation5], 1
    %406 = vsyncpa [#allocation8], 1
    %407 = vsyncpa [#allocation6], 1

</llo_original>
